<compile_context>
chip_gen: v7x
topology: tpu7x:2x2x1
jax: 0.10.0
libtpu: 0.0.40
codegen_flags: <defaults>
</compile_context>

<pallas_src>
import functools

import jax
import jax.numpy as jnp
from jax.experimental import pallas as pl
from jax.experimental.pallas import tpu as pltpu

LANES = 128            # vreg lane width
SUBLANES = 8           # f32 sublane tile
MAX_BLOCK_ROWS = 512   # 512*128*4 B = 256 KiB per block per operand


def _round_up(x, m):
    return ((x + m - 1) // m) * m


def _noise_kernel(x_ref, n_ref, o_ref, *, sigma):
    # Fused scale + add on the VPU; one full-vreg store per tile.
    o_ref[...] = x_ref[...] + jnp.float32(sigma) * n_ref[...]


def noise_forward(x, key, use_noise, sigma=0.2):
    """Pallas implementation of Noise.forward.

    x: float array of any shape.  key: jax PRNG key standing in for torch's
    global RNG state (explicit keying keeps the result deterministic).
    """
    if not use_noise:
        # PyTorch returns the input untouched on this branch.
        return x

    orig_shape = x.shape
    orig_dtype = x.dtype

    # Draw N(0, 1) noise with the same shape as x (matches
    # torch.FloatTensor(x.size()).normal_()).
    noise = jax.random.normal(key, orig_shape, dtype=jnp.float32)

    flat_x = x.reshape(-1).astype(jnp.float32)
    flat_n = noise.reshape(-1)
    n = flat_x.shape[0]

    # Lane-dense 2-D view: last dim = 128 lanes, rows padded to a sublane- and
    # block-aligned multiple so every load/store is a full vreg.
    rows = pl.cdiv(n, LANES)
    block_rows = min(MAX_BLOCK_ROWS, _round_up(rows, SUBLANES))
    rows_padded = _round_up(rows, block_rows)
    grid = rows_padded // block_rows

    pad = rows_padded * LANES - n
    x2d = jnp.pad(flat_x, (0, pad)).reshape(rows_padded, LANES)
    n2d = jnp.pad(flat_n, (0, pad)).reshape(rows_padded, LANES)

    out2d = pl.pallas_call(
        functools.partial(_noise_kernel, sigma=float(sigma)),
        out_shape=jax.ShapeDtypeStruct((rows_padded, LANES), jnp.float32),
        grid=(grid,),
        in_specs=[
            pl.BlockSpec((block_rows, LANES), lambda i: (i, 0)),
            pl.BlockSpec((block_rows, LANES), lambda i: (i, 0)),
        ],
        out_specs=pl.BlockSpec((block_rows, LANES), lambda i: (i, 0)),
        compiler_params=pltpu.CompilerParams(
            dimension_semantics=("parallel",),
        ),
    )(x2d, n2d)

    return out2d.reshape(-1)[:n].reshape(orig_shape).astype(orig_dtype)


noise_forward_jit = jax.jit(noise_forward, static_argnames=("use_noise", "sigma"))


# -----------------------------------------------------------------------------
if __name__ == "__main__":
    key = jax.random.PRNGKey(0)
    x_key, noise_key = jax.random.split(key)

    batch, channels, H, W = 2, 4, 16, 16
    sigma = 0.2

    x = jax.random.normal(x_key, (batch, channels, H, W), jnp.float32)

    # use_noise=True path: fused scale + add of Gaussian noise.
    y = noise_forward_jit(x, noise_key, use_noise=True, sigma=sigma)
    y = jax.block_until_ready(y)

    assert y.shape == x.shape, y.shape
    assert bool(jnp.all(jnp.isfinite(y)))
    assert not bool(jnp.allclose(y, x))          # noise was actually added
    z = (y - x) / sigma                          # should be ~ N(0, 1)
    assert abs(float(jnp.mean(z))) < 0.2, float(jnp.mean(z))
    assert 0.7 < float(jnp.std(z)) < 1.3, float(jnp.std(z))

    # use_noise=False path: identity, matching the PyTorch module.
    y_id = noise_forward_jit(x, noise_key, use_noise=False, sigma=sigma)
    y_id = jax.block_until_ready(y_id)
    assert bool(jnp.array_equal(y_id, x))

    print("KERNEL_OK")
</pallas_src>

<mosaic_0001>
module attributes {stable_mosaic.version = 11 : i64} {
  func.func @_noise_kernel(%arg0: i32, %arg1: memref<16x128xf32, #tpu.memory_space<vmem>>, %arg2: memref<16x128xf32, #tpu.memory_space<vmem>>, %arg3: memref<16x128xf32, #tpu.memory_space<vmem>>) attributes {dimension_semantics = [#tpu.dimension_semantics<parallel>], iteration_bounds = array<i64: 1>, scalar_prefetch = 0 : i64, scratch_operands = 0 : i64, tpu.core_type = #tpu.core_type<tc>, window_params = [{transform_indices = @transform_0, window_bounds = array<i64: 16, 128>}, {transform_indices = @transform_1, window_bounds = array<i64: 16, 128>}, {transform_indices = @transform_2, window_bounds = array<i64: 16, 128>}]} {
    %c0 = arith.constant 0 : index
    %c0_0 = arith.constant 0 : index
    %0 = vector.load %arg1[%c0, %c0_0] : memref<16x128xf32, #tpu.memory_space<vmem>>, vector<16x128xf32>
    %c0_1 = arith.constant 0 : index
    %c0_2 = arith.constant 0 : index
    %1 = vector.load %arg2[%c0_1, %c0_2] : memref<16x128xf32, #tpu.memory_space<vmem>>, vector<16x128xf32>
    %cst = arith.constant 2.000000e-01 : f32
    %2 = vector.broadcast %cst : f32 to vector<16x128xf32>
    %3 = arith.mulf %2, %1 : vector<16x128xf32>
    %4 = arith.addf %0, %3 : vector<16x128xf32>
    %c0_3 = arith.constant 0 : index
    %c0_4 = arith.constant 0 : index
    %5 = vector.load %arg3[%c0_3, %c0_4] : memref<16x128xf32, #tpu.memory_space<vmem>>, vector<16x128xf32>
    tpu.vector_store %arg3[%c0_3, %c0_4], %4 {strides = array<i32>} : memref<16x128xf32, #tpu.memory_space<vmem>>, vector<16x128xf32>,
    return
  }
  func.func @transform_0(%arg0: i32) -> (i32, i32) {
    %c0_i32 = arith.constant 0 : i32
    %c0_i32_0 = arith.constant 0 : i32
    return %arg0, %c0_i32 : i32, i32
  }
  func.func @transform_1(%arg0: i32) -> (i32, i32) {
    %c0_i32 = arith.constant 0 : i32
    %c0_i32_0 = arith.constant 0 : i32
    return %arg0, %c0_i32 : i32, i32
  }
  func.func @transform_2(%arg0: i32) -> (i32, i32) {
    %c0_i32 = arith.constant 0 : i32
    %c0_i32_0 = arith.constant 0 : i32
    return %arg0, %c0_i32 : i32, i32
  }
}

</mosaic_0001>

<llo_original>
// kernel: noise_forward.1
$region0: #{noise_forward.1}
  #allocation0 [shape = 'u32[]', space=smem, size = 0x4, offset = 0x4, fixed_abs, tag = 'smem constant byte address 0x4 - core index']
  #allocation1 [shape = 'u32[144,128]{1,0:T(1,128)}', space=vmem, size = 0x12000, scoped, tag = 'internal scratch']
  %s0 = inlined_call_operand.vmem [shape: f32[16,128], index: 0, kind: input, shape index: {}]
  %s1 = inlined_call_operand.vmem [shape: f32[16,128], index: 1, kind: input, shape index: {}]
  %s2 = inlined_call_operand.vmem [shape: f32[16,128], index: 2, kind: output, shape index: {}]
  %s3 = sld [smem:[#allocation0]]
  $region18: #{noise_forward.1} parent=0
    _
  %s5 = ssub.s32 1, %s3
  %s6 = scalar_select 0, %s5, %s3
  // Predicated region
  $region2: #{noise_forward.1} parent=0 // pred_check
    _
  $region3: #{noise_forward.1} parent=0 // pred_check_branch
    %8 = sbr.rel (0) target = $region5
  $region4: #{noise_forward.1} parent=0 // pred_region
    _
  $region5: #{noise_forward.1} parent=0 // pred_fallthru
    _
  // Predicated region
  $region6: #{noise_forward.1} parent=0 // pred_check
    _
  $region7: #{noise_forward.1} parent=0 // pred_check_branch
    %10 = sbr.rel (0) target = $region9
  $region8: #{noise_forward.1} parent=0 // pred_region
    _
  $region9: #{noise_forward.1} parent=0 // pred_fallthru
    _
  %v11 = vld [vmem:[%s0] sm:$0xff]
  %v12 = vld [vmem:[%s0 + $0x8] sm:$0xff]
  %v13 = vld [vmem:[%s1] sm:$0xff]
  %v14 = vld [vmem:[%s1 + $0x8] sm:$0xff]
  %v15 = vmul.f32 %v13, 0.2
  %v16 = vmul.f32 %v14, 0.2
  %v17 = vadd.f32 %v11, %v15
  %v18 = vadd.f32 %v12, %v16
  %19 = vst [vmem:[%s2] sm:$0xff] %v17
  %20 = vst [vmem:[%s2 + $0x8] sm:$0xff] %v18
  // Predicated region
  $region10: #{noise_forward.1} parent=0 // pred_check
    _
  $region11: #{noise_forward.1} parent=0 // pred_check_branch
    %22 = sbr.rel (0) target = $region13
  $region12: #{noise_forward.1} parent=0 // pred_region
    _
  $region13: #{noise_forward.1} parent=0 // pred_fallthru
    _
  // Predicated region
  $region14: #{noise_forward.1} parent=0 // pred_check
    _
  $region15: #{noise_forward.1} parent=0 // pred_check_branch
    %24 = sbr.rel (0) target = $region17
  $region16: #{noise_forward.1} parent=0 // pred_region
    _
  $region17: #{noise_forward.1} parent=0 // pred_fallthru
    _

</llo_original>
